<compile_context>
chip_gen: v5e
topology: v5e:2x2
jax: 0.10.0
libtpu: 0.0.40
codegen_flags: <defaults>
</compile_context>

<pallas_src>
import jax
import jax.numpy as jnp
from jax.experimental import pallas as pl
from jax.experimental.pallas import tpu as pltpu


def _round_up(n, m):
    return ((n + m - 1) // m) * m


def sequential_kernel(x_ref, w1_ref, b1_ref, w2_ref, b2_ref, o_ref):
    """Fused forward of the Sequential chain (one batch tile per grid step).

    x_ref:  [TB, D_in]      flattened input tile (bf16)
    w1_ref: [D_in, H_pad]   Linear1 weight, pre-transposed [in, out], zero-padded (bf16)
    b1_ref: [1, H_pad]      Linear1 bias, zero-padded (f32)
    w2_ref: [H_pad, O_pad]  Linear2 weight, pre-transposed [in, out], zero-padded (bf16)
    b2_ref: [1, O_pad]      Linear2 bias, zero-padded (f32)
    o_ref:  [TB, O_pad]     output tile (lane-dense, f32)
    """
    x = x_ref[...]

    # Linear(D_in -> H): bf16 MXU matmul, f32 accumulation, fused bias add.
    h = jnp.dot(x, w1_ref[...], preferred_element_type=jnp.float32) + b1_ref[...]

    # ReLU (padded hidden lanes are 0 and stay 0).
    h = jnp.maximum(h, 0.0)

    # Linear(H -> O): bf16 MXU matmul, f32 accumulation, fused bias add.
    y = jnp.dot(h.astype(w2_ref.dtype), w2_ref[...],
                preferred_element_type=jnp.float32) + b2_ref[...]

    o_ref[...] = y.astype(o_ref.dtype)


def prepare_params(w1, b1, w2, b2, *, compute_dtype=jnp.bfloat16):
    """One-time parameter prep (call at init, NOT per forward).

    Transposes weights to [in, out], zero-pads feature dims to 128 lanes, and
    casts the streamed weights to bf16. Biases stay f32 (added to f32 acc).
    """
    H, D_in = w1.shape
    O = w2.shape[0]
    H_pad = _round_up(H, 128)
    O_pad = _round_up(O, 128)

    w1_t = jnp.zeros((D_in, H_pad), compute_dtype).at[:, :H].set(
        w1.T.astype(compute_dtype))
    b1_p = jnp.zeros((1, H_pad), jnp.float32).at[:, :H].set(b1.astype(jnp.float32))
    w2_t = jnp.zeros((H_pad, O_pad), compute_dtype).at[:H, :O].set(
        w2.T.astype(compute_dtype))
    b2_p = jnp.zeros((1, O_pad), jnp.float32).at[:, :O].set(b2.astype(jnp.float32))

    return {"w1_t": w1_t, "b1_p": b1_p, "w2_t": w2_t, "b2_p": b2_p,
            "in_features": D_in, "out_features": O}


def sequential_forward(x_nchw, params, *, tb_target=512, min_grid_steps=2):
    """Flatten (wrapper glue) + fused, batch-gridded Pallas kernel."""
    w1_t, b1_p = params["w1_t"], params["b1_p"]
    w2_t, b2_p = params["w2_t"], params["b2_p"]
    O = params["out_features"]
    D_in, H_pad = w1_t.shape
    O_pad = w2_t.shape[1]

    B = x_nchw.shape[0]
    # Flatten(start_dim=1) + bf16 cast of the streamed operand; no padded copy.
    x_flat = x_nchw.reshape(B, -1).astype(w1_t.dtype)
    assert x_flat.shape[1] == D_in

    # Batch tile selection:
    #  * If B is small / not a multiple of 8, use the whole batch as one block
    #    (block == full array dims is always legal).
    #  * Otherwise use a multiple-of-8 tile capped at tb_target, sized so the
    #    grid has >= min_grid_steps (keeps both v7x TensorCores busy). The last
    #    block may be ragged; Pallas masks the out-of-bounds rows.
    if B % 8 != 0 and B <= tb_target:
        TB = B
    else:
        per_step = _round_up(pl.cdiv(B, min_grid_steps), 8)
        TB = max(8, min(tb_target, per_step))
    grid = (pl.cdiv(B, TB),)

    out = pl.pallas_call(
        sequential_kernel,
        out_shape=jax.ShapeDtypeStruct((B, O_pad), jnp.float32),
        grid=grid,
        in_specs=[
            pl.BlockSpec((TB, D_in), lambda i: (i, 0)),      # x: streamed over batch
            pl.BlockSpec((D_in, H_pad), lambda i: (0, 0)),   # W1^T: VMEM-resident
            pl.BlockSpec((1, H_pad), lambda i: (0, 0)),      # b1:   VMEM-resident
            pl.BlockSpec((H_pad, O_pad), lambda i: (0, 0)),  # W2^T: VMEM-resident
            pl.BlockSpec((1, O_pad), lambda i: (0, 0)),      # b2:   VMEM-resident
        ],
        out_specs=pl.BlockSpec((TB, O_pad), lambda i: (i, 0)),
        compiler_params=pltpu.CompilerParams(
            dimension_semantics=("parallel",),
        ),
    )(x_flat, w1_t, b1_p, w2_t, b2_p)

    return out[:, :O]


def init_linear_params(key, out_features, in_features):
    """Deterministic init mimicking PyTorch nn.Linear (uniform +-1/sqrt(in))."""
    kw, kb = jax.random.split(key)
    bound = 1.0 / (in_features ** 0.5)
    w = jax.random.uniform(kw, (out_features, in_features), jnp.float32, -bound, bound)
    b = jax.random.uniform(kb, (out_features,), jnp.float32, -bound, bound)
    return w, b


if __name__ == "__main__":
    # Small shapes consistent with the forward: NCHW image input.
    B, C, Hs, Ws = 2, 4, 16, 16        # input [2, 4, 16, 16]
    D_in = C * Hs * Ws                 # 1024
    HID, OUT = 32, 10

    key = jax.random.PRNGKey(0)
    kx, k1, k2 = jax.random.split(key, 3)

    x = jax.random.normal(kx, (B, C, Hs, Ws), jnp.float32)
    w1, b1 = init_linear_params(k1, HID, D_in)
    w2, b2 = init_linear_params(k2, OUT, HID)

    # One-time parameter prep (transpose / pad / bf16 cast), then fused forward.
    params = prepare_params(w1, b1, w2, b2)
    y = sequential_forward(x, params)
    y = jax.block_until_ready(y)

    # Pure-JAX f32 reference of the same Sequential chain. Tolerance relaxed to
    # 2e-2 because the kernel streams bf16 operands (f32 accumulation).
    x_flat = x.reshape(B, -1)
    ref = jnp.maximum(x_flat @ w1.T + b1, 0.0) @ w2.T + b2
    assert y.shape == (B, OUT)
    assert jnp.allclose(y, ref, atol=2e-2, rtol=2e-2), float(jnp.max(jnp.abs(y - ref)))

    print("KERNEL_OK")
</pallas_src>

<mosaic_0001>
module attributes {stable_mosaic.version = 11 : i64} {
  func.func @sequential_kernel(%arg0: i32, %arg1: memref<2x1024xbf16, #tpu.memory_space<vmem>>, %arg2: memref<1024x128xbf16, #tpu.memory_space<vmem>>, %arg3: memref<1x128xf32, #tpu.memory_space<vmem>>, %arg4: memref<128x128xbf16, #tpu.memory_space<vmem>>, %arg5: memref<1x128xf32, #tpu.memory_space<vmem>>, %arg6: memref<2x128xf32, #tpu.memory_space<vmem>>) attributes {dimension_semantics = [#tpu.dimension_semantics<parallel>], iteration_bounds = array<i64: 1>, scalar_prefetch = 0 : i64, scratch_operands = 0 : i64, tpu.core_type = #tpu.core_type<tc>, window_params = [{transform_indices = @transform_0, window_bounds = array<i64: 2, 1024>}, {pipeline_mode = #tpu.pipeline_mode<synchronous>, transform_indices = @transform_1, window_bounds = array<i64: 1024, 128>}, {pipeline_mode = #tpu.pipeline_mode<synchronous>, transform_indices = @transform_2, window_bounds = array<i64: 1, 128>}, {pipeline_mode = #tpu.pipeline_mode<synchronous>, transform_indices = @transform_3, window_bounds = array<i64: 128, 128>}, {pipeline_mode = #tpu.pipeline_mode<synchronous>, transform_indices = @transform_4, window_bounds = array<i64: 1, 128>}, {transform_indices = @transform_5, window_bounds = array<i64: 2, 128>}]} {
    %c0 = arith.constant 0 : index
    %c0_0 = arith.constant 0 : index
    %0 = vector.load %arg1[%c0, %c0_0] : memref<2x1024xbf16, #tpu.memory_space<vmem>>, vector<2x1024xbf16>
    %c0_1 = arith.constant 0 : index
    %c0_2 = arith.constant 0 : index
    %1 = vector.load %arg2[%c0_1, %c0_2] : memref<1024x128xbf16, #tpu.memory_space<vmem>>, vector<1024x128xbf16>
    %cst = arith.constant dense<0.000000e+00> : vector<2x128xf32>
    %2 = tpu.matmul %0, %1, %cst {dimension_numbers = #tpu.dot_dimension_numbers<[1], [0], [0], [1], [0, 0, 1, 1], [], []>} : vector<2x1024xbf16>, vector<1024x128xbf16>, vector<2x128xf32> -> vector<2x128xf32>
    %c0_3 = arith.constant 0 : index
    %c0_4 = arith.constant 0 : index
    %3 = vector.load %arg3[%c0_3, %c0_4] : memref<1x128xf32, #tpu.memory_space<vmem>>, vector<1x128xf32>
    %4 = vector.broadcast %3 : vector<1x128xf32> to vector<2x128xf32>
    %5 = arith.addf %2, %4 : vector<2x128xf32>
    %cst_5 = arith.constant 0.000000e+00 : f32
    %6 = vector.broadcast %cst_5 : f32 to vector<2x128xf32>
    %7 = arith.maximumf %5, %6 : vector<2x128xf32>
    %8 = arith.truncf %7 : vector<2x128xf32> to vector<2x128xbf16>
    %c0_6 = arith.constant 0 : index
    %c0_7 = arith.constant 0 : index
    %9 = vector.load %arg4[%c0_6, %c0_7] : memref<128x128xbf16, #tpu.memory_space<vmem>>, vector<128x128xbf16>
    %cst_8 = arith.constant dense<0.000000e+00> : vector<2x128xf32>
    %10 = tpu.matmul %8, %9, %cst_8 {dimension_numbers = #tpu.dot_dimension_numbers<[1], [0], [0], [1], [0, 0, 1, 1], [], []>} : vector<2x128xbf16>, vector<128x128xbf16>, vector<2x128xf32> -> vector<2x128xf32>
    %c0_9 = arith.constant 0 : index
    %c0_10 = arith.constant 0 : index
    %11 = vector.load %arg5[%c0_9, %c0_10] : memref<1x128xf32, #tpu.memory_space<vmem>>, vector<1x128xf32>
    %12 = vector.broadcast %11 : vector<1x128xf32> to vector<2x128xf32>
    %13 = arith.addf %10, %12 : vector<2x128xf32>
    %c0_11 = arith.constant 0 : index
    %c0_12 = arith.constant 0 : index
    %14 = vector.load %arg6[%c0_11, %c0_12] : memref<2x128xf32, #tpu.memory_space<vmem>>, vector<2x128xf32>
    tpu.vector_store %arg6[%c0_11, %c0_12], %13 {strides = array<i32>} : memref<2x128xf32, #tpu.memory_space<vmem>>, vector<2x128xf32>,
    return
  }
  func.func @transform_0(%arg0: i32) -> (i32, i32) {
    %c0_i32 = arith.constant 0 : i32
    %c0_i32_0 = arith.constant 0 : i32
    return %arg0, %c0_i32 : i32, i32
  }
  func.func @transform_1(%arg0: i32) -> (i32, i32) {
    %c0_i32 = arith.constant 0 : i32
    %c0_i32_0 = arith.constant 0 : i32
    %c0_i32_1 = arith.constant 0 : i32
    return %c0_i32, %c0_i32_0 : i32, i32
  }
  func.func @transform_2(%arg0: i32) -> (i32, i32) {
    %c0_i32 = arith.constant 0 : i32
    %c0_i32_0 = arith.constant 0 : i32
    %c0_i32_1 = arith.constant 0 : i32
    return %c0_i32, %c0_i32_0 : i32, i32
  }
  func.func @transform_3(%arg0: i32) -> (i32, i32) {
    %c0_i32 = arith.constant 0 : i32
    %c0_i32_0 = arith.constant 0 : i32
    %c0_i32_1 = arith.constant 0 : i32
    return %c0_i32, %c0_i32_0 : i32, i32
  }
  func.func @transform_4(%arg0: i32) -> (i32, i32) {
    %c0_i32 = arith.constant 0 : i32
    %c0_i32_0 = arith.constant 0 : i32
    %c0_i32_1 = arith.constant 0 : i32
    return %c0_i32, %c0_i32_0 : i32, i32
  }
  func.func @transform_5(%arg0: i32) -> (i32, i32) {
    %c0_i32 = arith.constant 0 : i32
    %c0_i32_0 = arith.constant 0 : i32
    return %arg0, %c0_i32 : i32, i32
  }
}

</mosaic_0001>

<llo_original>
// kernel: tpu_custom_call.1
$region0: #{tpu_custom_call.1}
  #allocation0 [shape = 'u32[]', space=smem, size = 0x4, offset = 0x4, fixed_abs, tag = 'smem constant byte address 0x4 - core index']
  #allocation1 [shape = 'u32[72,128]{1,0:T(1,128)}', space=vmem, size = 0x9000, scoped, tag = 'internal scratch']
  %s0 = inlined_call_operand.hbm [shape: bf16[2,1024], index: 0, kind: input, shape index: {}]
  %s1 = inlined_call_operand.hbm [shape: bf16[1024,128], index: 1, kind: input, shape index: {}]
  %s2 = inlined_call_operand.vmem [shape: f32[1,128], index: 2, kind: input, shape index: {}]
  %s3 = inlined_call_operand.hbm [shape: bf16[128,128], index: 3, kind: input, shape index: {}]
  %s4 = inlined_call_operand.vmem [shape: f32[1,128], index: 4, kind: input, shape index: {}]
  %s5 = inlined_call_operand.hbm [shape: f32[2,128], index: 5, kind: output, shape index: {}]
  %s6 = sld [smem:[#allocation0]]
  $region42: #{tpu_custom_call.1} parent=0
    _
  %s8 = ssub.s32 1, %s6
  %s9 = scalar_select 0, %s8, %s6
  $region1: #{tpu_custom_call.1} parent=0
    #allocation2 [shape = 'u8[4096]{0}', space=vmem, size = 0x1000, scoped, tag = 'input window, operand 0, single buffered']
    #allocation3 [shape = 's32[1]{0}', space=sflag, size = 0x4, scoped, tag = 'scoped memory for tpu_custom_call.1']
    #allocation4 [shape = 's32[1]{0}', space=sflag, size = 0x4, scoped, tag = 'scoped memory for tpu_custom_call.1']
    #allocation5 [shape = 'u8[262144]{0}', space=vmem, size = 0x40000, scoped, tag = 'input window, operand 1, single buffered']
    #allocation6 [shape = 's32[1]{0}', space=sflag, size = 0x4, scoped, tag = 'scoped memory for tpu_custom_call.1']
    #allocation7 [shape = 'u8[32768]{0}', space=vmem, size = 0x8000, scoped, tag = 'input window, operand 3, single buffered']
    #allocation8 [shape = 'u8[1024]{0}', space=vmem, size = 0x400, scoped, tag = 'output window, operand 0, single buffered']
    %10 = vsyncpa [#allocation3], 0
    %11 = vsyncpa [#allocation6], 0
    %12 = vsyncpa [#allocation4], 0
    // Predicated region
    $region2: #{tpu_custom_call.1} parent=1 // pred_check
      _
    $region3: #{tpu_custom_call.1} parent=1 // pred_check_branch
      %14 = sbr.rel (0) target = $region5
    $region4: #{tpu_custom_call.1} parent=1 // pred_region
      %16 = vsyncadd [#allocation3], 0
      %s18 = sshll.u32 %s0, 4
      %s19 = int_to_ptr.hbm [resolvable:$true] %s18
      %s20 = sshll.u32 [#allocation2], 4
      %s21 = int_to_ptr.vmem [resolvable:$true] %s20
      %23 = dma.hbm_to_vmem [thread:$0]  %s19, 128, %s21, [#allocation3]
    $region5: #{tpu_custom_call.1} parent=1 // pred_fallthru
      _
    // Predicated region
    $region6: #{tpu_custom_call.1} parent=1 // pred_check
      _
    $region7: #{tpu_custom_call.1} parent=1 // pred_check_branch
      %25 = sbr.rel (0) target = $region9
    $region8: #{tpu_custom_call.1} parent=1 // pred_region
      %27 = vsyncadd [#allocation6], 0
      %s28 = sshll.u32 %s1, 4
      %s29 = int_to_ptr.hbm [resolvable:$true] %s28
      %s30 = sshll.u32 [#allocation5], 4
      %s31 = int_to_ptr.vmem [resolvable:$true] %s30
      %36 = dma.hbm_to_vmem [thread:$0]  %s29, 8192, %s31, [#allocation6], 64, 64, 4
    $region9: #{tpu_custom_call.1} parent=1 // pred_fallthru
      _
    // Predicated region
    $region10: #{tpu_custom_call.1} parent=1 // pred_check
      _
    $region11: #{tpu_custom_call.1} parent=1 // pred_check_branch
      %38 = sbr.rel (0) target = $region13
    $region12: #{tpu_custom_call.1} parent=1 // pred_region
      _
    $region13: #{tpu_custom_call.1} parent=1 // pred_fallthru
      _
    // Predicated region
    $region14: #{tpu_custom_call.1} parent=1 // pred_check
      _
    $region15: #{tpu_custom_call.1} parent=1 // pred_check_branch
      %40 = sbr.rel (0) target = $region17
    $region16: #{tpu_custom_call.1} parent=1 // pred_region
      %42 = vsyncadd [#allocation6], 0
      %s43 = sshll.u32 %s3, 4
      %s44 = int_to_ptr.hbm [resolvable:$true] %s43
      %s45 = sshll.u32 [#allocation7], 4
      %s46 = int_to_ptr.vmem [resolvable:$true] %s45
      %51 = dma.hbm_to_vmem [thread:$0]  %s44, 1024, %s46, [#allocation6], 64, 64, 4
    $region17: #{tpu_custom_call.1} parent=1 // pred_fallthru
      _
    // Predicated region
    $region18: #{tpu_custom_call.1} parent=1 // pred_check
      _
    $region19: #{tpu_custom_call.1} parent=1 // pred_check_branch
      %53 = sbr.rel (0) target = $region21
    $region20: #{tpu_custom_call.1} parent=1 // pred_region
      _
    $region21: #{tpu_custom_call.1} parent=1 // pred_fallthru
      _
    // Predicated region
    $region22: #{tpu_custom_call.1} parent=1 // pred_check
      _
    $region23: #{tpu_custom_call.1} parent=1 // pred_check_branch
      %55 = sbr.rel (0) target = $region25
    $region24: #{tpu_custom_call.1} parent=1 // pred_region
      %57 = dma.done [#allocation3], 128
    $region25: #{tpu_custom_call.1} parent=1 // pred_fallthru
      _
    // Predicated region
    $region26: #{tpu_custom_call.1} parent=1 // pred_check
      _
    $region27: #{tpu_custom_call.1} parent=1 // pred_check_branch
      %59 = sbr.rel (0) target = $region29
    $region28: #{tpu_custom_call.1} parent=1 // pred_region
      %61 = dma.done [#allocation6], 8192
    $region29: #{tpu_custom_call.1} parent=1 // pred_fallthru
      _
    // Predicated region
    $region30: #{tpu_custom_call.1} parent=1 // pred_check
      _
    $region31: #{tpu_custom_call.1} parent=1 // pred_check_branch
      %63 = sbr.rel (0) target = $region33
    $region32: #{tpu_custom_call.1} parent=1 // pred_region
      %65 = dma.done [#allocation6], 1024
    $region33: #{tpu_custom_call.1} parent=1 // pred_fallthru
      _
    %v66 = vld [vmem:[#allocation2] sm:$0xff]
    %v67 = vld [vmem:[#allocation5] sm:$0xf]
    %v68 = vld [vmem:[#allocation5 + $0x4] sm:$0xf]
    %v69 = vld [vmem:[#allocation5 + $0x8] sm:$0xf]
    %v70 = vld [vmem:[#allocation5 + $0xc] sm:$0xf]
    %v71 = vld [vmem:[#allocation5 + $0x10] sm:$0xf]
    %v72 = vld [vmem:[#allocation5 + $0x14] sm:$0xf]
    %v73 = vld [vmem:[#allocation5 + $0x18] sm:$0xf]
    %v74 = vld [vmem:[#allocation5 + $0x1c] sm:$0xf]
    %v75 = vld [vmem:[#allocation5 + $0x20] sm:$0xf]
    %v76 = vld [vmem:[#allocation5 + $0x24] sm:$0xf]
    %v77 = vld [vmem:[#allocation5 + $0x28] sm:$0xf]
    %v78 = vld [vmem:[#allocation5 + $0x2c] sm:$0xf]
    %v79 = vld [vmem:[#allocation5 + $0x30] sm:$0xf]
    %v80 = vld [vmem:[#allocation5 + $0x34] sm:$0xf]
    %v81 = vld [vmem:[#allocation5 + $0x38] sm:$0xf]
    %v82 = vld [vmem:[#allocation5 + $0x3c] sm:$0xf]
    %v83 = vld [vmem:[#allocation5 + $0x40] sm:$0xf]
    %v84 = vld [vmem:[#allocation5 + $0x44] sm:$0xf]
    %v85 = vld [vmem:[#allocation5 + $0x48] sm:$0xf]
    %v86 = vld [vmem:[#allocation5 + $0x4c] sm:$0xf]
    %v87 = vld [vmem:[#allocation5 + $0x50] sm:$0xf]
    %v88 = vld [vmem:[#allocation5 + $0x54] sm:$0xf]
    %v89 = vld [vmem:[#allocation5 + $0x58] sm:$0xf]
    %v90 = vld [vmem:[#allocation5 + $0x5c] sm:$0xf]
    %v91 = vld [vmem:[#allocation5 + $0x60] sm:$0xf]
    %v92 = vld [vmem:[#allocation5 + $0x64] sm:$0xf]
    %v93 = vld [vmem:[#allocation5 + $0x68] sm:$0xf]
    %v94 = vld [vmem:[#allocation5 + $0x6c] sm:$0xf]
    %v95 = vld [vmem:[#allocation5 + $0x70] sm:$0xf]
    %v96 = vld [vmem:[#allocation5 + $0x74] sm:$0xf]
    %v97 = vld [vmem:[#allocation5 + $0x78] sm:$0xf]
    %v98 = vld [vmem:[#allocation5 + $0x7c] sm:$0xf]
    %v99 = vld [vmem:[#allocation5 + $0x80] sm:$0xf]
    %v100 = vld [vmem:[#allocation5 + $0x84] sm:$0xf]
    %v101 = vld [vmem:[#allocation5 + $0x88] sm:$0xf]
    %v102 = vld [vmem:[#allocation5 + $0x8c] sm:$0xf]
    %v103 = vld [vmem:[#allocation5 + $0x90] sm:$0xf]
    %v104 = vld [vmem:[#allocation5 + $0x94] sm:$0xf]
    %v105 = vld [vmem:[#allocation5 + $0x98] sm:$0xf]
    %v106 = vld [vmem:[#allocation5 + $0x9c] sm:$0xf]
    %v107 = vld [vmem:[#allocation5 + $0xa0] sm:$0xf]
    %v108 = vld [vmem:[#allocation5 + $0xa4] sm:$0xf]
    %v109 = vld [vmem:[#allocation5 + $0xa8] sm:$0xf]
    %v110 = vld [vmem:[#allocation5 + $0xac] sm:$0xf]
    %v111 = vld [vmem:[#allocation5 + $0xb0] sm:$0xf]
    %v112 = vld [vmem:[#allocation5 + $0xb4] sm:$0xf]
    %v113 = vld [vmem:[#allocation5 + $0xb8] sm:$0xf]
    %v114 = vld [vmem:[#allocation5 + $0xbc] sm:$0xf]
    %v115 = vld [vmem:[#allocation5 + $0xc0] sm:$0xf]
    %v116 = vld [vmem:[#allocation5 + $0xc4] sm:$0xf]
    %v117 = vld [vmem:[#allocation5 + $0xc8] sm:$0xf]
    %v118 = vld [vmem:[#allocation5 + $0xcc] sm:$0xf]
    %v119 = vld [vmem:[#allocation5 + $0xd0] sm:$0xf]
    %v120 = vld [vmem:[#allocation5 + $0xd4] sm:$0xf]
    %v121 = vld [vmem:[#allocation5 + $0xd8] sm:$0xf]
    %v122 = vld [vmem:[#allocation5 + $0xdc] sm:$0xf]
    %v123 = vld [vmem:[#allocation5 + $0xe0] sm:$0xf]
    %v124 = vld [vmem:[#allocation5 + $0xe4] sm:$0xf]
    %v125 = vld [vmem:[#allocation5 + $0xe8] sm:$0xf]
    %v126 = vld [vmem:[#allocation5 + $0xec] sm:$0xf]
    %v127 = vld [vmem:[#allocation5 + $0xf0] sm:$0xf]
    %v128 = vld [vmem:[#allocation5 + $0xf4] sm:$0xf]
    %v129 = vld [vmem:[#allocation5 + $0xf8] sm:$0xf]
    %v130 = vld [vmem:[#allocation5 + $0xfc] sm:$0xf]
    %v131 = vld [vmem:[#allocation5 + $0x100] sm:$0xf]
    %v132 = vld [vmem:[#allocation5 + $0x104] sm:$0xf]
    %v133 = vld [vmem:[#allocation5 + $0x108] sm:$0xf]
    %v134 = vld [vmem:[#allocation5 + $0x10c] sm:$0xf]
    %v135 = vld [vmem:[#allocation5 + $0x110] sm:$0xf]
    %v136 = vld [vmem:[#allocation5 + $0x114] sm:$0xf]
    %v137 = vld [vmem:[#allocation5 + $0x118] sm:$0xf]
    %v138 = vld [vmem:[#allocation5 + $0x11c] sm:$0xf]
    %v139 = vld [vmem:[#allocation5 + $0x120] sm:$0xf]
    %v140 = vld [vmem:[#allocation5 + $0x124] sm:$0xf]
    %v141 = vld [vmem:[#allocation5 + $0x128] sm:$0xf]
    %v142 = vld [vmem:[#allocation5 + $0x12c] sm:$0xf]
    %v143 = vld [vmem:[#allocation5 + $0x130] sm:$0xf]
    %v144 = vld [vmem:[#allocation5 + $0x134] sm:$0xf]
    %v145 = vld [vmem:[#allocation5 + $0x138] sm:$0xf]
    %v146 = vld [vmem:[#allocation5 + $0x13c] sm:$0xf]
    %v147 = vld [vmem:[#allocation5 + $0x140] sm:$0xf]
    %v148 = vld [vmem:[#allocation5 + $0x144] sm:$0xf]
    %v149 = vld [vmem:[#allocation5 + $0x148] sm:$0xf]
    %v150 = vld [vmem:[#allocation5 + $0x14c] sm:$0xf]
    %v151 = vld [vmem:[#allocation5 + $0x150] sm:$0xf]
    %v152 = vld [vmem:[#allocation5 + $0x154] sm:$0xf]
    %v153 = vld [vmem:[#allocation5 + $0x158] sm:$0xf]
    %v154 = vld [vmem:[#allocation5 + $0x15c] sm:$0xf]
    %v155 = vld [vmem:[#allocation5 + $0x160] sm:$0xf]
    %v156 = vld [vmem:[#allocation5 + $0x164] sm:$0xf]
    %v157 = vld [vmem:[#allocation5 + $0x168] sm:$0xf]
    %v158 = vld [vmem:[#allocation5 + $0x16c] sm:$0xf]
    %v159 = vld [vmem:[#allocation5 + $0x170] sm:$0xf]
    %v160 = vld [vmem:[#allocation5 + $0x174] sm:$0xf]
    %v161 = vld [vmem:[#allocation5 + $0x178] sm:$0xf]
    %v162 = vld [vmem:[#allocation5 + $0x17c] sm:$0xf]
    %v163 = vld [vmem:[#allocation5 + $0x180] sm:$0xf]
    %v164 = vld [vmem:[#allocation5 + $0x184] sm:$0xf]
    %v165 = vld [vmem:[#allocation5 + $0x188] sm:$0xf]
    %v166 = vld [vmem:[#allocation5 + $0x18c] sm:$0xf]
    %v167 = vld [vmem:[#allocation5 + $0x190] sm:$0xf]
    %v168 = vld [vmem:[#allocation5 + $0x194] sm:$0xf]
    %v169 = vld [vmem:[#allocation5 + $0x198] sm:$0xf]
    %v170 = vld [vmem:[#allocation5 + $0x19c] sm:$0xf]
    %v171 = vld [vmem:[#allocation5 + $0x1a0] sm:$0xf]
    %v172 = vld [vmem:[#allocation5 + $0x1a4] sm:$0xf]
    %v173 = vld [vmem:[#allocation5 + $0x1a8] sm:$0xf]
    %v174 = vld [vmem:[#allocation5 + $0x1ac] sm:$0xf]
    %v175 = vld [vmem:[#allocation5 + $0x1b0] sm:$0xf]
    %v176 = vld [vmem:[#allocation5 + $0x1b4] sm:$0xf]
    %v177 = vld [vmem:[#allocation5 + $0x1b8] sm:$0xf]
    %v178 = vld [vmem:[#allocation5 + $0x1bc] sm:$0xf]
    %v179 = vld [vmem:[#allocation5 + $0x1c0] sm:$0xf]
    %v180 = vld [vmem:[#allocation5 + $0x1c4] sm:$0xf]
    %v181 = vld [vmem:[#allocation5 + $0x1c8] sm:$0xf]
    %v182 = vld [vmem:[#allocation5 + $0x1cc] sm:$0xf]
    %v183 = vld [vmem:[#allocation5 + $0x1d0] sm:$0xf]
    %v184 = vld [vmem:[#allocation5 + $0x1d4] sm:$0xf]
    %v185 = vld [vmem:[#allocation5 + $0x1d8] sm:$0xf]
    %v186 = vld [vmem:[#allocation5 + $0x1dc] sm:$0xf]
    %v187 = vld [vmem:[#allocation5 + $0x1e0] sm:$0xf]
    %v188 = vld [vmem:[#allocation5 + $0x1e4] sm:$0xf]
    %v189 = vld [vmem:[#allocation5 + $0x1e8] sm:$0xf]
    %v190 = vld [vmem:[#allocation5 + $0x1ec] sm:$0xf]
    %v191 = vld [vmem:[#allocation5 + $0x1f0] sm:$0xf]
    %v192 = vld [vmem:[#allocation5 + $0x1f4] sm:$0xf]
    %v193 = vld [vmem:[#allocation5 + $0x1f8] sm:$0xf]
    %v194 = vld [vmem:[#allocation5 + $0x1fc] sm:$0xf]
    %v195 = vld [vmem:[%s2] sm:$0x1]
    %v197 = vperm.slane %v195, 0
    %200 = vst [vmem:[#allocation1] ss:$9 sm:$0xff] %v66
    %v201 = vld [vmem:[#allocation1] sm:$0xff]
    %v202 = vld [vmem:[#allocation1 + $0x9] sm:$0xff]
    %v203 = vld [vmem:[#allocation1 + $0x12] sm:$0xff]
    %v204 = vld [vmem:[#allocation1 + $0x1b] sm:$0xff]
    %v205 = vld [vmem:[#allocation1 + $0x24] sm:$0xff]
    %v206 = vld [vmem:[#allocation1 + $0x2d] sm:$0xff]
    %v207 = vld [vmem:[#allocation1 + $0x36] sm:$0xff]
    %v208 = vld [vmem:[#allocation1 + $0x3f] sm:$0xff]
    %v345 = vunpack.c.l.b16 %v67
    %v346 = vunpack.c.l.b16 %v68
    %v347 = vunpack.c.l.b16 %v69
    %v348 = vunpack.c.l.b16 %v70
    %v349 = vunpack.c.l.b16 %v71
    %v350 = vunpack.c.l.b16 %v72
    %v351 = vunpack.c.l.b16 %v73
    %v352 = vunpack.c.l.b16 %v74
    %v353 = vunpack.c.l.b16 %v75
    %v354 = vunpack.c.l.b16 %v76
    %v355 = vunpack.c.l.b16 %v77
    %v356 = vunpack.c.l.b16 %v78
    %v357 = vunpack.c.l.b16 %v79
    %v358 = vunpack.c.l.b16 %v80
    %v359 = vunpack.c.l.b16 %v81
    %v360 = vunpack.c.l.b16 %v82
    %v361 = vunpack.c.l.b16 %v83
    %v362 = vunpack.c.l.b16 %v84
    %v363 = vunpack.c.l.b16 %v85
    %v364 = vunpack.c.l.b16 %v86
    %v365 = vunpack.c.l.b16 %v87
    %v366 = vunpack.c.l.b16 %v88
    %v367 = vunpack.c.l.b16 %v89
    %v368 = vunpack.c.l.b16 %v90
    %v369 = vunpack.c.l.b16 %v91
    %v370 = vunpack.c.l.b16 %v92
    %v371 = vunpack.c.l.b16 %v93
    %v372 = vunpack.c.l.b16 %v94
    %v373 = vunpack.c.l.b16 %v95
    %v374 = vunpack.c.l.b16 %v96
    %v375 = vunpack.c.l.b16 %v97
    %v376 = vunpack.c.l.b16 %v98
    %v377 = vunpack.c.l.b16 %v99
    %v378 = vunpack.c.l.b16 %v100
    %v379 = vunpack.c.l.b16 %v101
    %v380 = vunpack.c.l.b16 %v102
    %v381 = vunpack.c.l.b16 %v103
    %v382 = vunpack.c.l.b16 %v104
    %v383 = vunpack.c.l.b16 %v105
    %v384 = vunpack.c.l.b16 %v106
    %v385 = vunpack.c.l.b16 %v107
    %v386 = vunpack.c.l.b16 %v108
    %v387 = vunpack.c.l.b16 %v109
    %v388 = vunpack.c.l.b16 %v110
    %v389 = vunpack.c.l.b16 %v111
    %v390 = vunpack.c.l.b16 %v112
    %v391 = vunpack.c.l.b16 %v113
    %v392 = vunpack.c.l.b16 %v114
    %v393 = vunpack.c.l.b16 %v115
    %v394 = vunpack.c.l.b16 %v116
    %v395 = vunpack.c.l.b16 %v117
    %v396 = vunpack.c.l.b16 %v118
    %v397 = vunpack.c.l.b16 %v119
    %v398 = vunpack.c.l.b16 %v120
    %v399 = vunpack.c.l.b16 %v121
    %v400 = vunpack.c.l.b16 %v122
    %v401 = vunpack.c.l.b16 %v123
    %v402 = vunpack.c.l.b16 %v124
    %v403 = vunpack.c.l.b16 %v125
    %v404 = vunpack.c.l.b16 %v126
    %v405 = vunpack.c.l.b16 %v127
    %v406 = vunpack.c.l.b16 %v128
    %v407 = vunpack.c.l.b16 %v129
    %v408 = vunpack.c.l.b16 %v130
    %v409 = vunpack.c.l.b16 %v131
    %v410 = vunpack.c.l.b16 %v132
    %v411 = vunpack.c.l.b16 %v133
    %v412 = vunpack.c.l.b16 %v134
    %v413 = vunpack.c.l.b16 %v135
    %v414 = vunpack.c.l.b16 %v136
    %v415 = vunpack.c.l.b16 %v137
    %v416 = vunpack.c.l.b16 %v138
    %v417 = vunpack.c.l.b16 %v139
    %v418 = vunpack.c.l.b16 %v140
    %v419 = vunpack.c.l.b16 %v141
    %v420 = vunpack.c.l.b16 %v142
    %v421 = vunpack.c.l.b16 %v143
    %v422 = vunpack.c.l.b16 %v144
    %v423 = vunpack.c.l.b16 %v145
    %v424 = vunpack.c.l.b16 %v146
    %v425 = vunpack.c.l.b16 %v147
    %v426 = vunpack.c.l.b16 %v148
    %v427 = vunpack.c.l.b16 %v149
    %v428 = vunpack.c.l.b16 %v150
    %v429 = vunpack.c.l.b16 %v151
    %v430 = vunpack.c.l.b16 %v152
    %v431 = vunpack.c.l.b16 %v153
    %v432 = vunpack.c.l.b16 %v154
    %v433 = vunpack.c.l.b16 %v155
    %v434 = vunpack.c.l.b16 %v156
    %v435 = vunpack.c.l.b16 %v157
    %v436 = vunpack.c.l.b16 %v158
    %v437 = vunpack.c.l.b16 %v159
    %v438 = vunpack.c.l.b16 %v160
    %v439 = vunpack.c.l.b16 %v161
    %v440 = vunpack.c.l.b16 %v162
    %v441 = vunpack.c.l.b16 %v163
    %v442 = vunpack.c.l.b16 %v164
    %v443 = vunpack.c.l.b16 %v165
    %v444 = vunpack.c.l.b16 %v166
    %v445 = vunpack.c.l.b16 %v167
    %v446 = vunpack.c.l.b16 %v168
    %v447 = vunpack.c.l.b16 %v169
    %v448 = vunpack.c.l.b16 %v170
    %v449 = vunpack.c.l.b16 %v171
    %v450 = vunpack.c.l.b16 %v172
    %v451 = vunpack.c.l.b16 %v173
    %v452 = vunpack.c.l.b16 %v174
    %v453 = vunpack.c.l.b16 %v175
    %v454 = vunpack.c.l.b16 %v176
    %v455 = vunpack.c.l.b16 %v177
    %v456 = vunpack.c.l.b16 %v178
    %v457 = vunpack.c.l.b16 %v179
    %v458 = vunpack.c.l.b16 %v180
    %v459 = vunpack.c.l.b16 %v181
    %v460 = vunpack.c.l.b16 %v182
    %v461 = vunpack.c.l.b16 %v183
    %v462 = vunpack.c.l.b16 %v184
    %v463 = vunpack.c.l.b16 %v185
    %v464 = vunpack.c.l.b16 %v186
    %v465 = vunpack.c.l.b16 %v187
    %v466 = vunpack.c.l.b16 %v188
    %v467 = vunpack.c.l.b16 %v189
    %v468 = vunpack.c.l.b16 %v190
    %v469 = vunpack.c.l.b16 %v191
    %v470 = vunpack.c.l.b16 %v192
    %v471 = vunpack.c.l.b16 %v193
    %v472 = vunpack.c.l.b16 %v194
    %v473 = vpack.c.b16 %v346, %v345
    %v474 = vpack.c.b16 %v348, %v347
    %v475 = vpack.c.b16 %v350, %v349
    %v476 = vpack.c.b16 %v352, %v351
    %v477 = vpack.c.b16 %v354, %v353
    %v478 = vpack.c.b16 %v356, %v355
    %v479 = vpack.c.b16 %v358, %v357
    %v480 = vpack.c.b16 %v360, %v359
    %v481 = vpack.c.b16 %v362, %v361
    %v482 = vpack.c.b16 %v364, %v363
    %v483 = vpack.c.b16 %v366, %v365
    %v484 = vpack.c.b16 %v368, %v367
    %v485 = vpack.c.b16 %v370, %v369
    %v486 = vpack.c.b16 %v372, %v371
    %v487 = vpack.c.b16 %v374, %v373
    %v488 = vpack.c.b16 %v376, %v375
    %v489 = vpack.c.b16 %v378, %v377
    %v490 = vpack.c.b16 %v380, %v379
    %v491 = vpack.c.b16 %v382, %v381
    %v492 = vpack.c.b16 %v384, %v383
    %v493 = vpack.c.b16 %v386, %v385
    %v494 = vpack.c.b16 %v388, %v387
    %v495 = vpack.c.b16 %v390, %v389
    %v496 = vpack.c.b16 %v392, %v391
    %v497 = vpack.c.b16 %v394, %v393
    %v498 = vpack.c.b16 %v396, %v395
    %v499 = vpack.c.b16 %v398, %v397
    %v500 = vpack.c.b16 %v400, %v399
    %v501 = vpack.c.b16 %v402, %v401
    %v502 = vpack.c.b16 %v404, %v403
    %v503 = vpack.c.b16 %v406, %v405
    %v504 = vpack.c.b16 %v408, %v407
    %v505 = vpack.c.b16 %v410, %v409
    %v506 = vpack.c.b16 %v412, %v411
    %v507 = vpack.c.b16 %v414, %v413
    %v508 = vpack.c.b16 %v416, %v415
    %v509 = vpack.c.b16 %v418, %v417
    %v510 = vpack.c.b16 %v420, %v419
    %v511 = vpack.c.b16 %v422, %v421
    %v512 = vpack.c.b16 %v424, %v423
    %v513 = vpack.c.b16 %v426, %v425
    %v514 = vpack.c.b16 %v428, %v427
    %v515 = vpack.c.b16 %v430, %v429
    %v516 = vpack.c.b16 %v432, %v431
    %v517 = vpack.c.b16 %v434, %v433
    %v518 = vpack.c.b16 %v436, %v435
    %v519 = vpack.c.b16 %v438, %v437
    %v520 = vpack.c.b16 %v440, %v439
    %v521 = vpack.c.b16 %v442, %v441
    %v522 = vpack.c.b16 %v444, %v443
    %v523 = vpack.c.b16 %v446, %v445
    %v524 = vpack.c.b16 %v448, %v447
    %v525 = vpack.c.b16 %v450, %v449
    %v526 = vpack.c.b16 %v452, %v451
    %v527 = vpack.c.b16 %v454, %v453
    %v528 = vpack.c.b16 %v456, %v455
    %v529 = vpack.c.b16 %v458, %v457
    %v530 = vpack.c.b16 %v460, %v459
    %v531 = vpack.c.b16 %v462, %v461
    %v532 = vpack.c.b16 %v464, %v463
    %v533 = vpack.c.b16 %v466, %v465
    %v534 = vpack.c.b16 %v468, %v467
    %v535 = vpack.c.b16 %v470, %v469
    %v536 = vpack.c.b16 %v472, %v471
    %601 = vmatpush.bf16.msra.mxu0 %v480
    %602 = vmatpush.bf16.msra.mxu0 %v479
    %603 = vmatpush.bf16.msra.mxu0 %v478
    %604 = vmatpush.bf16.msra.mxu0 %v477
    %605 = vmatpush.bf16.msra.mxu0 %v476
    %606 = vmatpush.bf16.msra.mxu0 %v475
    %607 = vmatpush.bf16.msra.mxu0 %v474
    %608 = vmatpush.bf16.msra.mxu0 %v473
    %609 = vmatmul.bf16.gmra.mxu0 %v201
    %v610 = vpop.f32.mrf.mxu0
    %v611 = vadd.f32 %v197, %v610
    %v612 = vpop.f32.mrf.mxu0
    %613 = vdwg.mxu0
    %614 = vmatpush.bf16.msra.mxu0 %v488
    %615 = vmatpush.bf16.msra.mxu0 %v487
    %616 = vmatpush.bf16.msra.mxu0 %v486
    %617 = vmatpush.bf16.msra.mxu0 %v485
    %618 = vmatpush.bf16.msra.mxu0 %v484
    %619 = vmatpush.bf16.msra.mxu0 %v483
    %620 = vmatpush.bf16.msra.mxu0 %v482
    %621 = vmatpush.bf16.msra.mxu0 %v481
    %622 = vmatmul.bf16.gmra.mxu0 %v202
    %v623 = vpop.f32.mrf.mxu0
    %v624 = vadd.f32 %v611, %v623
    %v625 = vpop.f32.mrf.mxu0
    %626 = vdwg.mxu0
    %627 = vmatpush.bf16.msra.mxu0 %v496
    %628 = vmatpush.bf16.msra.mxu0 %v495
    %629 = vmatpush.bf16.msra.mxu0 %v494
    %630 = vmatpush.bf16.msra.mxu0 %v493
    %631 = vmatpush.bf16.msra.mxu0 %v492
    %632 = vmatpush.bf16.msra.mxu0 %v491
    %633 = vmatpush.bf16.msra.mxu0 %v490
    %634 = vmatpush.bf16.msra.mxu0 %v489
    %635 = vmatmul.bf16.gmra.mxu0 %v203
    %v636 = vpop.f32.mrf.mxu0
    %v637 = vadd.f32 %v624, %v636
    %v638 = vpop.f32.mrf.mxu0
    %639 = vdwg.mxu0
    %640 = vmatpush.bf16.msra.mxu0 %v504
    %641 = vmatpush.bf16.msra.mxu0 %v503
    %642 = vmatpush.bf16.msra.mxu0 %v502
    %643 = vmatpush.bf16.msra.mxu0 %v501
    %644 = vmatpush.bf16.msra.mxu0 %v500
    %645 = vmatpush.bf16.msra.mxu0 %v499
    %646 = vmatpush.bf16.msra.mxu0 %v498
    %647 = vmatpush.bf16.msra.mxu0 %v497
    %648 = vmatmul.bf16.gmra.mxu0 %v204
    %v649 = vpop.f32.mrf.mxu0
    %v650 = vadd.f32 %v637, %v649
    %v651 = vpop.f32.mrf.mxu0
    %652 = vdwg.mxu0
    %653 = vmatpush.bf16.msra.mxu0 %v512
    %654 = vmatpush.bf16.msra.mxu0 %v511
    %655 = vmatpush.bf16.msra.mxu0 %v510
    %656 = vmatpush.bf16.msra.mxu0 %v509
    %657 = vmatpush.bf16.msra.mxu0 %v508
    %658 = vmatpush.bf16.msra.mxu0 %v507
    %659 = vmatpush.bf16.msra.mxu0 %v506
    %660 = vmatpush.bf16.msra.mxu0 %v505
    %661 = vmatmul.bf16.gmra.mxu0 %v205
    %v662 = vpop.f32.mrf.mxu0
    %v663 = vadd.f32 %v650, %v662
    %v664 = vpop.f32.mrf.mxu0
    %665 = vdwg.mxu0
    %666 = vmatpush.bf16.msra.mxu0 %v520
    %667 = vmatpush.bf16.msra.mxu0 %v519
    %668 = vmatpush.bf16.msra.mxu0 %v518
    %669 = vmatpush.bf16.msra.mxu0 %v517
    %670 = vmatpush.bf16.msra.mxu0 %v516
    %671 = vmatpush.bf16.msra.mxu0 %v515
    %672 = vmatpush.bf16.msra.mxu0 %v514
    %673 = vmatpush.bf16.msra.mxu0 %v513
    %674 = vmatmul.bf16.gmra.mxu0 %v206
    %v675 = vpop.f32.mrf.mxu0
    %v676 = vadd.f32 %v663, %v675
    %v677 = vpop.f32.mrf.mxu0
    %678 = vdwg.mxu0
    %679 = vmatpush.bf16.msra.mxu0 %v528
    %680 = vmatpush.bf16.msra.mxu0 %v527
    %681 = vmatpush.bf16.msra.mxu0 %v526
    %682 = vmatpush.bf16.msra.mxu0 %v525
    %683 = vmatpush.bf16.msra.mxu0 %v524
    %684 = vmatpush.bf16.msra.mxu0 %v523
    %685 = vmatpush.bf16.msra.mxu0 %v522
    %686 = vmatpush.bf16.msra.mxu0 %v521
    %687 = vmatmul.bf16.gmra.mxu0 %v207
    %v688 = vpop.f32.mrf.mxu0
    %v689 = vadd.f32 %v676, %v688
    %v690 = vpop.f32.mrf.mxu0
    %691 = vdwg.mxu0
    %692 = vmatpush.bf16.msra.mxu0 %v536
    %693 = vmatpush.bf16.msra.mxu0 %v535
    %694 = vmatpush.bf16.msra.mxu0 %v534
    %695 = vmatpush.bf16.msra.mxu0 %v533
    %696 = vmatpush.bf16.msra.mxu0 %v532
    %697 = vmatpush.bf16.msra.mxu0 %v531
    %698 = vmatpush.bf16.msra.mxu0 %v530
    %699 = vmatpush.bf16.msra.mxu0 %v529
    %700 = vmatmul.bf16.gmra.mxu0 %v208
    %v701 = vpop.f32.mrf.mxu0
    %v702 = vadd.f32 %v689, %v701
    %v703 = vpop.f32.mrf.mxu0
    %704 = vdwg.mxu0
    %v705 = vmax.f32 %v702, 0.0
    %v706 = vpack.c.bf16 %v705, %v705
    %v707 = vld [vmem:[#allocation7] sm:$0xf]
    %v708 = vld [vmem:[#allocation7 + $0x4] sm:$0xf]
    %v709 = vld [vmem:[#allocation7 + $0x8] sm:$0xf]
    %v710 = vld [vmem:[#allocation7 + $0xc] sm:$0xf]
    %v711 = vld [vmem:[#allocation7 + $0x10] sm:$0xf]
    %v712 = vld [vmem:[#allocation7 + $0x14] sm:$0xf]
    %v713 = vld [vmem:[#allocation7 + $0x18] sm:$0xf]
    %v714 = vld [vmem:[#allocation7 + $0x1c] sm:$0xf]
    %v715 = vld [vmem:[#allocation7 + $0x20] sm:$0xf]
    %v716 = vld [vmem:[#allocation7 + $0x24] sm:$0xf]
    %v717 = vld [vmem:[#allocation7 + $0x28] sm:$0xf]
    %v718 = vld [vmem:[#allocation7 + $0x2c] sm:$0xf]
    %v719 = vld [vmem:[#allocation7 + $0x30] sm:$0xf]
    %v720 = vld [vmem:[#allocation7 + $0x34] sm:$0xf]
    %v721 = vld [vmem:[#allocation7 + $0x38] sm:$0xf]
    %v722 = vld [vmem:[#allocation7 + $0x3c] sm:$0xf]
    %v723 = vld [vmem:[%s4] sm:$0x1]
    %v725 = vperm.slane %v723, 0
    %v743 = vunpack.c.l.b16 %v707
    %v744 = vunpack.c.l.b16 %v708
    %v745 = vunpack.c.l.b16 %v709
    %v746 = vunpack.c.l.b16 %v710
    %v747 = vunpack.c.l.b16 %v711
    %v748 = vunpack.c.l.b16 %v712
    %v749 = vunpack.c.l.b16 %v713
    %v750 = vunpack.c.l.b16 %v714
    %v751 = vunpack.c.l.b16 %v715
    %v752 = vunpack.c.l.b16 %v716
    %v753 = vunpack.c.l.b16 %v717
    %v754 = vunpack.c.l.b16 %v718
    %v755 = vunpack.c.l.b16 %v719
    %v756 = vunpack.c.l.b16 %v720
    %v757 = vunpack.c.l.b16 %v721
    %v758 = vunpack.c.l.b16 %v722
    %v759 = vpack.c.b16 %v744, %v743
    %v760 = vpack.c.b16 %v746, %v745
    %v761 = vpack.c.b16 %v748, %v747
    %v762 = vpack.c.b16 %v750, %v749
    %v763 = vpack.c.b16 %v752, %v751
    %v764 = vpack.c.b16 %v754, %v753
    %v765 = vpack.c.b16 %v756, %v755
    %v766 = vpack.c.b16 %v758, %v757
    %775 = vmatpush.bf16.msra.mxu0 %v766
    %776 = vmatpush.bf16.msra.mxu0 %v765
    %777 = vmatpush.bf16.msra.mxu0 %v764
    %778 = vmatpush.bf16.msra.mxu0 %v763
    %779 = vmatpush.bf16.msra.mxu0 %v762
    %780 = vmatpush.bf16.msra.mxu0 %v761
    %781 = vmatpush.bf16.msra.mxu0 %v760
    %782 = vmatpush.bf16.msra.mxu0 %v759
    %783 = vmatmul.bf16.gmra.mxu0 %v706
    %v784 = vpop.f32.mrf.mxu0
    %v785 = vadd.f32 %v725, %v784
    %v786 = vpop.f32.mrf.mxu0
    %787 = vdwg.mxu0
    %788 = vst [vmem:[#allocation8] sm:$0x3] %v785
    // Predicated region
    $region34: #{tpu_custom_call.1} parent=1 // pred_check
      _
    $region35: #{tpu_custom_call.1} parent=1 // pred_check_branch
      %790 = sbr.rel (0) target = $region37
    $region36: #{tpu_custom_call.1} parent=1 // pred_region
      %792 = vsyncadd [#allocation4], 0
      %s794 = sshll.u32 [#allocation8], 4
      %s795 = int_to_ptr.vmem [resolvable:$true] %s794
      %s796 = sshll.u32 %s5, 4
      %s797 = int_to_ptr.hbm [resolvable:$true] %s796
      %799 = dma.vmem_to_hbm [thread:$0]  %s795, 32, %s797, [#allocation4]
    $region37: #{tpu_custom_call.1} parent=1 // pred_fallthru
      _
    // Predicated region
    $region38: #{tpu_custom_call.1} parent=1 // pred_check
      _
    $region39: #{tpu_custom_call.1} parent=1 // pred_check_branch
      %801 = sbr.rel (0) target = $region41
    $region40: #{tpu_custom_call.1} parent=1 // pred_region
      %803 = dma.done [#allocation4], 32
    $region41: #{tpu_custom_call.1} parent=1 // pred_fallthru
      _
    %804 = vsyncpa [#allocation3], 1
    %805 = vsyncpa [#allocation6], 1
    %806 = vsyncpa [#allocation4], 1

</llo_original>
